<compile_context>
chip_gen: v6e
topology: v6e:2x2x1
jax: 0.10.0
libtpu: 0.0.40
codegen_flags: <defaults>
</compile_context>

<pallas_src>
import functools

import jax
import jax.numpy as jnp
from jax import lax
from jax.experimental import pallas as pl
from jax.experimental.pallas import tpu as pltpu


def _en_loss_kernel(x_ref, y_ref, out_ref, *, num_classes, total_rows):
    """Per-tile partial reduction.

    x_ref   : (TB, 2C) VMEM tile -- [class-0 logits | class-1 logits] per row
    y_ref   : (TB, C)  VMEM tile -- labels
    out_ref : (1, 8, 128) per-tile partials: sublane 0 = sum_rows sum_c(pos terms),
              sublane 1 = sum_rows max_c(neg terms)  (broadcast across lanes).
    """
    tb = x_ref.shape[0]
    c = num_classes

    x = x_ref[...].astype(jnp.float32)          # (TB, 2C)
    x0 = x[:, :c]                               # logits for class 0 ("neg")
    x1 = x[:, c:]                               # logits for class 1 ("pos")
    label = y_ref[...].astype(jnp.float32)      # (TB, C)

    # Exact 2-way softmax probabilities, stable via exp(-|d|):
    #   p_hi = 1 / (1 + exp(-|d|))   (prob of the larger logit's class)
    #   p_lo = exp(-|d|) * p_hi
    d = x1 - x0
    t = jnp.exp(-jnp.abs(d))                    # EUP, in (0, 1]
    inv = 1.0 / (1.0 + t)                       # exact divide (parity with torch)
    p_hi = inv
    p_lo = t * inv
    pos_hi = d >= 0.0
    nl_hi = -jnp.log(p_hi + 1e-8)               # -log(p + 1e-8), exact
    nl_lo = -jnp.log(p_lo + 1e-8)
    nl_pos = jnp.where(pos_hi, nl_hi, nl_lo)    # -log(softmax[:,1,:] + 1e-8)
    nl_neg = jnp.where(pos_hi, nl_lo, nl_hi)    # -log(softmax[:,0,:] + 1e-8)

    pos_row = jnp.sum(nl_pos * label, axis=1, keepdims=True)            # (TB, 1)
    neg_row = jnp.max(nl_neg * (1.0 - label), axis=1, keepdims=True)    # (TB, 1)

    # Mask padded rows of the (possibly partial) last tile AFTER the lane
    # reductions; select discards any garbage/NaN coming from OOB rows.
    row = pl.program_id(0) * tb + lax.broadcasted_iota(jnp.int32, (tb, 1), 0)
    valid = row < total_rows
    pos_partial = jnp.sum(jnp.where(valid, pos_row, 0.0))
    neg_partial = jnp.sum(jnp.where(valid, neg_row, 0.0))

    # One unmasked vector store: sublane 0 <- pos, sublane 1 <- neg.
    sub = lax.broadcasted_iota(jnp.int32, (1, 8, 128), 1)
    out_ref[...] = jnp.where(sub == 0, pos_partial,
                             jnp.where(sub == 1, neg_partial, 0.0))


def en_loss(inputs, target, *, block_rows=None):
    """inputs: (B, 2, C) float, target: (B, C) float -> scalar float32 loss."""
    B, two, C = inputs.shape
    assert two == 2
    assert target.shape == (B, C)

    # Free contiguous view: per row, first C lanes = class-0 logits, next C = class-1.
    x2 = inputs.reshape(B, 2 * C)

    # Per-generation VMEM budgeting (v5e/v6e: 128 MiB physical; v7x: 64 MiB).
    try:
        vmem_cap = pltpu.get_tpu_info().vmem_capacity_bytes
    except Exception:  # pragma: no cover - conservative fallback
        vmem_cap = 64 * 1024 * 1024
    if vmem_cap >= 100 * 1024 * 1024:
        dbuf_budget = 32 * 1024 * 1024     # bytes for double-buffered input tiles
        vmem_limit = 64 * 1024 * 1024
    else:                                  # v7x-class part: stay conservative
        dbuf_budget = 16 * 1024 * 1024
        vmem_limit = 32 * 1024 * 1024

    if block_rows is None:
        # Size tiles against the lane-padded widths (what VMEM actually holds).
        padded_x_w = pl.cdiv(2 * C, 128) * 128
        padded_y_w = pl.cdiv(C, 128) * 128
        per_row = 2 * (padded_x_w * x2.dtype.itemsize
                       + padded_y_w * target.dtype.itemsize)
        block_rows = max(8, dbuf_budget // per_row)

    # Guarantee >= 2 grid tiles when possible so the "parallel" axis can shard
    # across v7x's two TensorCores (single extra ~0.35us step elsewhere).
    if B > 8:
        block_rows = min(block_rows, ((pl.cdiv(B, 2) + 7) // 8) * 8)

    if block_rows >= B:
        block_rows = B                               # full-dim block is always legal
    else:
        block_rows = max(8, (block_rows // 8) * 8)   # keep sublane-aligned

    num_tiles = pl.cdiv(B, block_rows)
    kernel = functools.partial(_en_loss_kernel, num_classes=C, total_rows=B)

    partials = pl.pallas_call(
        kernel,
        out_shape=jax.ShapeDtypeStruct((num_tiles, 8, 128), jnp.float32),
        grid=(num_tiles,),
        in_specs=[
            pl.BlockSpec((block_rows, 2 * C), lambda i: (i, 0)),
            pl.BlockSpec((block_rows, C), lambda i: (i, 0)),
        ],
        out_specs=pl.BlockSpec((1, 8, 128), lambda i: (i, 0, 0)),
        compiler_params=pltpu.CompilerParams(
            dimension_semantics=("parallel",),   # tiles independent -> megacore on v7x
            vmem_limit_bytes=vmem_limit,
        ),
    )(x2, target)

    pos_sum = jnp.sum(partials[:, 0, 0])
    neg_sum = jnp.sum(partials[:, 1, 0])
    return 0.5 * (pos_sum + neg_sum) / B


def en_loss_ref(inputs, target):
    """Pure-JAX reference mirroring the PyTorch module."""
    out_open = jax.nn.softmax(inputs, axis=1)
    label = target.astype(jnp.float32)
    label_n = 1.0 - label
    open_loss_pos = jnp.mean(jnp.sum(-jnp.log(out_open[:, 1, :] + 1e-8) * label, axis=1))
    open_loss_neg = jnp.mean(jnp.max(-jnp.log(out_open[:, 0, :] + 1e-8) * label_n, axis=1))
    return 0.5 * (open_loss_neg + open_loss_pos)


if __name__ == "__main__":
    key = jax.random.PRNGKey(0)
    k1, k2 = jax.random.split(key)

    B, C = 20, 16
    inputs = jax.random.normal(k1, (B, 2, C), dtype=jnp.float32)
    # one-hot labels over C classes
    label_idx = jax.random.randint(k2, (B,), 0, C)
    target = jax.nn.one_hot(label_idx, C, dtype=jnp.float32)

    ref = en_loss_ref(inputs, target)

    # Multi-tile path with a masked partial last tile (3 tiles of 8 rows).
    loss_tiled = en_loss(inputs, target, block_rows=8)
    jax.block_until_ready(loss_tiled)
    assert jnp.allclose(loss_tiled, ref, atol=1e-5, rtol=1e-5), (loss_tiled, ref)

    # Auto-tiled path (>=2 tiles: 16 + masked 4).
    loss = en_loss(inputs, target)
    jax.block_until_ready(loss)
    assert jnp.allclose(loss, ref, atol=1e-5, rtol=1e-5), (loss, ref)

    print("KERNEL_OK")
</pallas_src>

<mosaic_0001>
module attributes {stable_mosaic.version = 11 : i64} {
  func.func @_en_loss_kernel(%arg0: i32, %arg1: memref<8x32xf32, #tpu.memory_space<vmem>>, %arg2: memref<8x16xf32, #tpu.memory_space<vmem>>, %arg3: memref<1x8x128xf32, #tpu.memory_space<vmem>>) attributes {dimension_semantics = [#tpu.dimension_semantics<parallel>], iteration_bounds = array<i64: 3>, scalar_prefetch = 0 : i64, scratch_operands = 0 : i64, tpu.core_type = #tpu.core_type<tc>, window_params = [{transform_indices = @transform_0, window_bounds = array<i64: 8, 32>}, {transform_indices = @transform_1, window_bounds = array<i64: 8, 16>}, {transform_indices = @transform_2, window_bounds = array<i64: 1, 8, 128>}]} {
    %c0 = arith.constant 0 : index
    %c0_0 = arith.constant 0 : index
    %0 = vector.load %arg1[%c0, %c0_0] : memref<8x32xf32, #tpu.memory_space<vmem>>, vector<8x32xf32>
    %1 = vector.extract_strided_slice %0 {offsets = [0, 0], sizes = [8, 16], strides = [1, 1]} : vector<8x32xf32> to vector<8x16xf32>
    %2 = vector.extract_strided_slice %0 {offsets = [0, 16], sizes = [8, 16], strides = [1, 1]} : vector<8x32xf32> to vector<8x16xf32>
    %c0_1 = arith.constant 0 : index
    %c0_2 = arith.constant 0 : index
    %3 = vector.load %arg2[%c0_1, %c0_2] : memref<8x16xf32, #tpu.memory_space<vmem>>, vector<8x16xf32>
    %4 = arith.subf %2, %1 : vector<8x16xf32>
    %5 = math.absf %4 : vector<8x16xf32>
    %cst = arith.constant 0.000000e+00 : f32
    %6 = vector.broadcast %cst : f32 to vector<8x16xf32>
    %7 = arith.subf %6, %5 : vector<8x16xf32>
    %8 = math.exp %7 : vector<8x16xf32>
    %cst_3 = arith.constant 1.000000e+00 : f32
    %9 = vector.broadcast %cst_3 : f32 to vector<8x16xf32>
    %10 = arith.addf %9, %8 : vector<8x16xf32>
    %cst_4 = arith.constant 1.000000e+00 : f32
    %11 = vector.broadcast %cst_4 : f32 to vector<8x16xf32>
    %12 = arith.divf %11, %10 : vector<8x16xf32>
    %13 = arith.mulf %8, %12 : vector<8x16xf32>
    %cst_5 = arith.constant 0.000000e+00 : f32
    %14 = vector.broadcast %cst_5 : f32 to vector<8x16xf32>
    %15 = arith.cmpf oge, %4, %14 : vector<8x16xf32>
    %cst_6 = arith.constant 9.99999993E-9 : f32
    %16 = vector.broadcast %cst_6 : f32 to vector<8x16xf32>
    %17 = arith.addf %12, %16 : vector<8x16xf32>
    %18 = math.log %17 : vector<8x16xf32>
    %cst_7 = arith.constant 0.000000e+00 : f32
    %19 = vector.broadcast %cst_7 : f32 to vector<8x16xf32>
    %20 = arith.subf %19, %18 : vector<8x16xf32>
    %cst_8 = arith.constant 9.99999993E-9 : f32
    %21 = vector.broadcast %cst_8 : f32 to vector<8x16xf32>
    %22 = arith.addf %13, %21 : vector<8x16xf32>
    %23 = math.log %22 : vector<8x16xf32>
    %cst_9 = arith.constant 0.000000e+00 : f32
    %24 = vector.broadcast %cst_9 : f32 to vector<8x16xf32>
    %25 = arith.subf %24, %23 : vector<8x16xf32>
    %26 = arith.select %15, %20, %25 : vector<8x16xi1>, vector<8x16xf32>
    %27 = arith.select %15, %25, %20 : vector<8x16xi1>, vector<8x16xf32>
    %28 = arith.mulf %26, %3 : vector<8x16xf32>
    %cst_10 = arith.constant dense<0.000000e+00> : vector<8xf32>
    %29 = vector.multi_reduction <add>, %28, %cst_10 [1] : vector<8x16xf32> to vector<8xf32>
    %30 = vector.shape_cast %29 : vector<8xf32> to vector<8x1xf32>
    %cst_11 = arith.constant 1.000000e+00 : f32
    %31 = vector.broadcast %cst_11 : f32 to vector<8x16xf32>
    %32 = arith.subf %31, %3 : vector<8x16xf32>
    %33 = arith.mulf %27, %32 : vector<8x16xf32>
    %cst_12 = arith.constant dense<0xFF800000> : vector<8xf32>
    %34 = vector.multi_reduction <maximumf>, %33, %cst_12 [1] : vector<8x16xf32> to vector<8xf32>
    %35 = vector.shape_cast %34 : vector<8xf32> to vector<8x1xf32>
    %c8_i32 = arith.constant 8 : i32
    %36 = arith.muli %arg0, %c8_i32 : i32
    %37 = tpu.iota {dimensions = array<i32: 0>} : vector<8x1xi32>
    %38 = vector.broadcast %36 : i32 to vector<8x1xi32>
    %39 = arith.addi %38, %37 : vector<8x1xi32>
    %c20_i32 = arith.constant 20 : i32
    %40 = vector.broadcast %c20_i32 : i32 to vector<8x1xi32>
    %41 = arith.cmpi slt, %39, %40 : vector<8x1xi32>
    %cst_13 = arith.constant 0.000000e+00 : f32
    %42 = vector.broadcast %cst_13 : f32 to vector<8x1xf32>
    %43 = arith.select %41, %30, %42 : vector<8x1xi1>, vector<8x1xf32>
    %44 = vector.shape_cast %43 : vector<8x1xf32> to vector<1x8x1xf32>
    %cst_14 = arith.constant dense<0.000000e+00> : vector<1xf32>
    %45 = vector.multi_reduction <add>, %44, %cst_14 [1, 2] : vector<1x8x1xf32> to vector<1xf32>
    %46 = vector.shape_cast %45 : vector<1xf32> to vector<1x1x1xf32>
    %47 = vector.extract %46[0, 0, 0] : f32 from vector<1x1x1xf32>
    %cst_15 = arith.constant 0.000000e+00 : f32
    %48 = vector.broadcast %cst_15 : f32 to vector<8x1xf32>
    %49 = arith.select %41, %35, %48 : vector<8x1xi1>, vector<8x1xf32>
    %50 = vector.shape_cast %49 : vector<8x1xf32> to vector<1x8x1xf32>
    %cst_16 = arith.constant dense<0.000000e+00> : vector<1xf32>
    %51 = vector.multi_reduction <add>, %50, %cst_16 [1, 2] : vector<1x8x1xf32> to vector<1xf32>
    %52 = vector.shape_cast %51 : vector<1xf32> to vector<1x1x1xf32>
    %53 = vector.extract %52[0, 0, 0] : f32 from vector<1x1x1xf32>
    %54 = tpu.iota {dimensions = array<i32: 1>} : vector<1x8x128xi32>
    %c0_i32 = arith.constant 0 : i32
    %55 = vector.broadcast %c0_i32 : i32 to vector<1x8x128xi32>
    %56 = arith.cmpi eq, %54, %55 : vector<1x8x128xi32>
    %c1_i32 = arith.constant 1 : i32
    %57 = vector.broadcast %c1_i32 : i32 to vector<1x8x128xi32>
    %58 = arith.cmpi eq, %54, %57 : vector<1x8x128xi32>
    %cst_17 = arith.constant 0.000000e+00 : f32
    %59 = vector.broadcast %53 : f32 to vector<1x8x128xf32>
    %60 = vector.broadcast %cst_17 : f32 to vector<1x8x128xf32>
    %61 = arith.select %58, %59, %60 : vector<1x8x128xi1>, vector<1x8x128xf32>
    %62 = vector.broadcast %47 : f32 to vector<1x8x128xf32>
    %63 = arith.select %56, %62, %61 : vector<1x8x128xi1>, vector<1x8x128xf32>
    %c0_18 = arith.constant 0 : index
    %c0_19 = arith.constant 0 : index
    %c0_20 = arith.constant 0 : index
    %64 = vector.load %arg3[%c0_18, %c0_19, %c0_20] : memref<1x8x128xf32, #tpu.memory_space<vmem>>, vector<1x8x128xf32>
    tpu.vector_store %arg3[%c0_18, %c0_19, %c0_20], %63 {strides = array<i32>} : memref<1x8x128xf32, #tpu.memory_space<vmem>>, vector<1x8x128xf32>,
    return
  }
  func.func @transform_0(%arg0: i32) -> (i32, i32) {
    %c0_i32 = arith.constant 0 : i32
    %c0_i32_0 = arith.constant 0 : i32
    return %arg0, %c0_i32 : i32, i32
  }
  func.func @transform_1(%arg0: i32) -> (i32, i32) {
    %c0_i32 = arith.constant 0 : i32
    %c0_i32_0 = arith.constant 0 : i32
    return %arg0, %c0_i32 : i32, i32
  }
  func.func @transform_2(%arg0: i32) -> (i32, i32, i32) {
    %c0_i32 = arith.constant 0 : i32
    %c0_i32_0 = arith.constant 0 : i32
    %c0_i32_1 = arith.constant 0 : i32
    return %arg0, %c0_i32, %c0_i32_0 : i32, i32, i32
  }
}

</mosaic_0001>

<llo_original>
// kernel: tpu_custom_call.1
$region0: #{tpu_custom_call.1}
  #allocation0 [shape = 'u32[]', space=smem, size = 0x4, offset = 0x4, fixed_abs, tag = 'smem constant byte address 0x4 - core index']
  #allocation1 [shape = 'u32[144,128]{1,0:T(1,128)}', space=vmem, size = 0x12000, scoped, tag = 'internal scratch']
  %s0 = inlined_call_operand.vmem [shape: f32[20,32], index: 0, kind: input, shape index: {}]
  %s1 = inlined_call_operand.vmem [shape: f32[20,16], index: 1, kind: input, shape index: {}]
  %s2 = inlined_call_operand.hbm [shape: f32[3,8,128], index: 2, kind: output, shape index: {}]
  %s3 = sld [smem:[#allocation0]]
  $region41: #{tpu_custom_call.1} parent=0
    _
  %s5 = ssub.s32 1, %s3
  %s6 = scalar_select 0, %s5, %s3
  $region1: #{tpu_custom_call.1} parent=0
    #allocation2 [shape = 'u8[8192]{0}', space=vmem, size = 0x2000, scoped, tag = 'output window, operand 0']
    #allocation3 [shape = 's32[2]{0}', space=sflag, size = 0x8, scoped, tag = 'scoped memory for tpu_custom_call.1']
    %7 = vsyncpa [#allocation3], 0
    %s8 = scalar_lea.sflag [#allocation3], 1
    %9 = vsyncpa %s8, 0
    loop: start=0, step=1, limit=5
    $region2: #{tpu_custom_call.1} parent=1 // loop_pre_header
      _
    $region3: #{tpu_custom_call.1} parent=1 // loop_header
      %s11 = sphi 0, %s15
      %p12 = scmp.ge.s32.totalorder %s11, 5
      %s21 = sphi 0, %s23
      %s24 = sphi 0, %s21
      %s25 = sphi 0, %s24
      %s41 = sphi 0, %s25
      %s47 = sphi 0, %s49
      %s50 = sphi 0, %s47
      %s51 = sphi 0, %s50
      %s67 = sphi 0, %s51
      %s73 = sphi 0, %s75
      %s76 = sphi 0, %s73
      %s77 = sphi 0, %s76
      %s93 = sphi 0, %s77
    $region4: #{tpu_custom_call.1} parent=1 // loop_header_branch
      %14 = sbr.rel (%p12) target = $region8
    $region5: #{tpu_custom_call.1} parent=1 // loop_body
      %s16 = ssub.s32 %s11, 1
      %s17 = ssub.s32 %s11, 2
      %s18 = sadd.s32 %s11, 1
      %s19 = ssub.s32 %s11, %s18
      %p20 = scmp.eq.s32.totalorder %s19, 0
      %s22 = sadd.s32 %s21, 1
      %s23 = scalar_select %p20, %s21, %s22
      %p26 = pneg %p20
      %p27 = scmp.eq.s32.totalorder %s11, 2
      %p28 = por %p26, %p27
      %p29 = scmp.ne.s32.totalorder %s21, %s24
      %p30 = scmp.eq.s32.totalorder %s11, 0
      %p31 = por %p29, %p30
      %p32 = scmp.ne.s32.totalorder %s21, %s24
      %p33 = scmp.eq.s32.totalorder %s16, 2
      %p34 = por %p32, %p33
      %p35 = scmp.ne.s32.totalorder %s24, %s25
      %p36 = scmp.eq.s32.totalorder %s16, 0
      %p37 = por %p35, %p36
      %p38 = scmp.ne.s32.totalorder %s24, %s25
      %p39 = scmp.eq.s32.totalorder %s17, 2
      %p40 = por %p38, %p39
      %p42 = scmp.ne.s32.totalorder %s25, %s41
      %p43 = scmp.eq.s32.totalorder %s17, 0
      %p44 = por %p42, %p43
      %s45 = ssub.s32 %s11, %s18
      %p46 = scmp.eq.s32.totalorder %s45, 0
      %s48 = sadd.s32 %s47, 1
      %s49 = scalar_select %p46, %s47, %s48
      %p52 = pneg %p46
      %p53 = scmp.eq.s32.totalorder %s11, 2
      %p54 = por %p52, %p53
      %p55 = scmp.ne.s32.totalorder %s47, %s50
      %p56 = scmp.eq.s32.totalorder %s11, 0
      %p57 = por %p55, %p56
      %p58 = scmp.ne.s32.totalorder %s47, %s50
      %p59 = scmp.eq.s32.totalorder %s16, 2
      %p60 = por %p58, %p59
      %p61 = scmp.ne.s32.totalorder %s50, %s51
      %p62 = scmp.eq.s32.totalorder %s16, 0
      %p63 = por %p61, %p62
      %p64 = scmp.ne.s32.totalorder %s50, %s51
      %p65 = scmp.eq.s32.totalorder %s17, 2
      %p66 = por %p64, %p65
      %p68 = scmp.ne.s32.totalorder %s51, %s67
      %p69 = scmp.eq.s32.totalorder %s17, 0
      %p70 = por %p68, %p69
      %s71 = ssub.s32 %s11, %s18
      %p72 = scmp.eq.s32.totalorder %s71, 0
      %s74 = sadd.s32 %s73, 1
      %s75 = scalar_select %p72, %s73, %s74
      %p78 = pneg %p72
      %p79 = scmp.eq.s32.totalorder %s11, 2
      %p80 = por %p78, %p79
      %p81 = scmp.ne.s32.totalorder %s73, %s76
      %p82 = scmp.eq.s32.totalorder %s11, 0
      %p83 = por %p81, %p82
      %p84 = scmp.ne.s32.totalorder %s73, %s76
      %p85 = scmp.eq.s32.totalorder %s16, 2
      %p86 = por %p84, %p85
      %p87 = scmp.ne.s32.totalorder %s76, %s77
      %p88 = scmp.eq.s32.totalorder %s16, 0
      %p89 = por %p87, %p88
      %p90 = scmp.ne.s32.totalorder %s76, %s77
      %p91 = scmp.eq.s32.totalorder %s17, 2
      %p92 = por %p90, %p91
      %p94 = scmp.ne.s32.totalorder %s77, %s93
      %p95 = scmp.eq.s32.totalorder %s17, 0
      %p96 = por %p94, %p95
      %p97 = scmp.le.s32.totalorder 1, %s11
      %p98 = scmp.lt.s32.totalorder %s11, 4
      %p99 = pnand %p97, %p98
      %p100 = pneg %p99
      // Predicated region
      $region9: #{tpu_custom_call.1} parent=5 // pred_check
        _
      $region10: #{tpu_custom_call.1} parent=5 // pred_check_branch
        %102 = sbr.rel (%p99) target = $region12
      $region11: #{tpu_custom_call.1} parent=5 // pred_region
        %s103 = ssub.s32 %s11, 1
      $region12: #{tpu_custom_call.1} parent=5 // pred_fallthru
        _
      %p104 = scmp.lt.s32.totalorder %s11, 3
      // Predicated region
      $region13: #{tpu_custom_call.1} parent=5 // pred_check
        %p105 = pneg %p104
      $region14: #{tpu_custom_call.1} parent=5 // pred_check_branch
        %107 = sbr.rel (%p105) target = $region16
      $region15: #{tpu_custom_call.1} parent=5 // pred_region
        // Predicated region
        $region17: #{tpu_custom_call.1} parent=15 // pred_check
          %p108 = pneg %p31
        $region18: #{tpu_custom_call.1} parent=15 // pred_check_branch
          %110 = sbr.rel (%p108) target = $region20
        $region19: #{tpu_custom_call.1} parent=15 // pred_region
          %p111 = scmp.lt.s32.totalorder %s11, 2
          %s112 = scalar_select %p111, %s11, 2
          %s113 = smul.addr %s112, 8
          %s114 = scalar_lea.vmem %s0, %s113
        $region20: #{tpu_custom_call.1} parent=15 // pred_fallthru
          _
        // Predicated region
        $region21: #{tpu_custom_call.1} parent=15 // pred_check
          %p115 = pneg %p57
        $region22: #{tpu_custom_call.1} parent=15 // pred_check_branch
          %117 = sbr.rel (%p115) target = $region24
        $region23: #{tpu_custom_call.1} parent=15 // pred_region
          %p118 = scmp.lt.s32.totalorder %s11, 2
          %s119 = scalar_select %p118, %s11, 2
          %s120 = smul.addr %s119, 8
          %s121 = scalar_lea.vmem %s1, %s120
        $region24: #{tpu_custom_call.1} parent=15 // pred_fallthru
          _
      $region16: #{tpu_custom_call.1} parent=5 // pred_fallthru
        _
      %p122 = scmp.le.s32.totalorder 1, %s11
      %p123 = scmp.lt.s32.totalorder %s11, 4
      %p124 = pnand %p122, %p123
      %p125 = pneg %p124
      // Predicated region
      $region25: #{tpu_custom_call.1} parent=5 // pred_check
        _
      $region26: #{tpu_custom_call.1} parent=5 // pred_check_branch
        %127 = sbr.rel (%p124) target = $region28
      $region27: #{tpu_custom_call.1} parent=5 // pred_region
        %s128 = ssub.s32 %s11, 1
        %p129 = scmp.lt.s32.totalorder %s16, 2
        %s130 = scalar_select %p129, %s16, 2
        %s131 = smul.addr %s130, 8
        %s132 = scalar_lea.vmem %s0, %s131
        %p133 = pneg %p37
        %p134 = pneg %p34
        %p135 = scmp.lt.s32.totalorder %s16, 2
        %s136 = scalar_select %p135, %s16, 2
        %s137 = smul.addr %s136, 8
        %s138 = scalar_lea.vmem %s1, %s137
        %p139 = pneg %p63
        %p140 = pneg %p60
        %p141 = pneg %p89
        %p142 = pneg %p86
        %s143 = sand.u32 %s76, 1
        %s144 = scalar_lea.sflag [#allocation3], %s143
        %s145 = sand.u32 %s76, 1
        %s146 = smul.addr %s145, 8
        %s147 = scalar_lea.vmem [#allocation2], %s146
        %p148 = scmp.lt.s32.totalorder %s16, 2
        %s149 = scalar_select %p148, %s16, 2
        %s150 = smul.addr %s149, 8
        %s151 = scalar_lea.vmem %s0, %s150
        %p152 = scmp.lt.s32.totalorder %s16, 2
        %s153 = scalar_select %p152, %s16, 2
        %s154 = smul.addr %s153, 8
        %s155 = scalar_lea.vmem %s1, %s154
        %v156 = vld [vmem:[%s151] sm:$0xff]
        %v157 = vld [vmem:[%s155] sm:$0xff]
        %159 = vrot.lane.b32.xlu0 %v156, 16
        %v160 = vpop.permute.xlu0 %159
        %v162 = vsub.f32 %v156, %v160
        %v163 = vand.u32 2147483647, %v162
        %v164 = vsub.f32 0.0, %v163
        %v165 = vmul.f32 %v164, 1.442695
        %v166 = vpow.pop %v165
        %v167 = vadd.f32 %v166, 1.0
        %v168 = vrcp.pop %v167
        %v169 = vmul.f32 1.0, %v168
        %v170 = vmul.f32 %v166, %v169
        %vm171 = vcmp.ge.f32.partialorder %v162, 0.0
        %v172 = vadd.f32 %v169, 1e-08
        %v173 = vlog2.pop %v172
        %v174 = vmul.f32 %v173, 0.6931472
        %v175 = vsub.f32 0.0, %v174
        %v176 = vadd.f32 %v170, 1e-08
        %v177 = vlog2.pop %v176
        %v178 = vmul.f32 %v177, 0.6931472
        %v179 = vsub.f32 0.0, %v178
        %v180 = vsel %vm171, %v175, %v179
        %v181 = vsel %vm171, %v179, %v175
        %183 = vrot.lane.b32.xlu0 %v157, 16
        %v184 = vpop.permute.xlu0 %183
        %v186 = vmul.f32 %v180, %v184
        %188 = vrot.lane.b32.xlu0 %v186, 112
        %v189 = vpop.permute.xlu0 %188
        %vm191 = vcmask 130048
        %v192 = vsel %vm191, %v189, 0.0
        %193 = vadd.xlane.f32.xlu0 %v192
        %v194 = vpop.xlane.xlu0 %193
        %v195 = vsub.f32 1.0, %v157
        %197 = vrot.lane.b32.xlu0 %v195, 16
        %v198 = vpop.permute.xlu0 %197
        %v200 = vmul.f32 %v181, %v198
        %vm201 = vcmask 261248
        %v202 = vsel %vm201, %v200, -inf
        %203 = vmax.xlane.f32.xlu0 %v202
        %v204 = vpop.xlane.xlu0 %203
        %s205 = smul.u32 %s16, 8
        %v206 = vlaneseq
        %v207 = vshrl.u32 %v206, 7
        %v208 = vstv %s205
        %v209 = vadd.s32 %v208, %v207
        %vm210 = vcmp.lt.s32.totalorder %v209, 20
        %v211 = vsel %vm210, %v194, 0.0
        %vm212 = vcmask 7168
        %v213 = vsel %vm212, %v211, 0.0
        %214 = vadd.xlane.f32.xlu0 %v213
        %v215 = vpop.xlane.xlu0 %214
        %v216 = vrot.slane %v215, 4
        %v217 = vadd.f32 %v215, %v216
        %v218 = vrot.slane %v217, 2
        %v219 = vadd.f32 %v217, %v218
        %v220 = vrot.slane %v219, 1
        %v221 = vadd.f32 %v219, %v220
        %s222 = vtos %v221
        %v223 = vsel %vm210, %v204, 0.0
        %v224 = vsel %vm212, %v223, 0.0
        %225 = vadd.xlane.f32.xlu0 %v224
        %v226 = vpop.xlane.xlu0 %225
        %v227 = vrot.slane %v226, 4
        %v228 = vadd.f32 %v226, %v227
        %v229 = vrot.slane %v228, 2
        %v230 = vadd.f32 %v228, %v229
        %v231 = vrot.slane %v230, 1
        %v232 = vadd.f32 %v230, %v231
        %s233 = vtos %v232
        %vm234 = vcmp.eq.s32.totalorder %v207, 0
        %vm235 = vcmp.eq.s32.totalorder %v207, 1
        %v236 = vstv %s233
        %v237 = vsel %vm235, %v236, 0.0
        %v238 = vstv %s222
        %v239 = vsel %vm234, %v238, %v237
        %240 = vst [vmem:[%s147] sm:$0xff] %v239
        %s241 = sand.u32 %s76, 1
        %s242 = scalar_lea.sflag [#allocation3], %s241
        %s243 = sand.u32 %s76, 1
        %s244 = smul.addr %s243, 8
        %s245 = scalar_lea.vmem [#allocation2], %s244
        // Predicated region
        $region29: #{tpu_custom_call.1} parent=27 // pred_check
          %p246 = pneg %p86
        $region30: #{tpu_custom_call.1} parent=27 // pred_check_branch
          %248 = sbr.rel (%p246) target = $region32
        $region31: #{tpu_custom_call.1} parent=27 // pred_region
          %s250 = ssub.s32 128, 128
          %251 = vsyncadd %s242, %s250
          %s252 = smul.addr %s16, 128
          %s253 = scalar_lea.hbm %s2, %s252
          %s255 = sshll.u32 %s245, 4
          %s256 = int_to_ptr.vmem [resolvable:$true] %s255
          %258 = dma.vmem_to_hbm [thread:$0]  %s256, 128, %s253, %s242
        $region32: #{tpu_custom_call.1} parent=27 // pred_fallthru
          _
      $region28: #{tpu_custom_call.1} parent=5 // pred_fallthru
        _
      %p259 = scmp.le.s32.totalorder 2, %s11
      // Predicated region
      $region33: #{tpu_custom_call.1} parent=5 // pred_check
        %p260 = pneg %p259
      $region34: #{tpu_custom_call.1} parent=5 // pred_check_branch
        %262 = sbr.rel (%p260) target = $region36
      $region35: #{tpu_custom_call.1} parent=5 // pred_region
        %s263 = ssub.s32 %s11, 2
        // Predicated region
        $region37: #{tpu_custom_call.1} parent=35 // pred_check
          %p264 = pneg %p92
        $region38: #{tpu_custom_call.1} parent=35 // pred_check_branch
          %266 = sbr.rel (%p264) target = $region40
        $region39: #{tpu_custom_call.1} parent=35 // pred_region
          %s267 = sand.u32 %s77, 1
          %s268 = scalar_lea.sflag [#allocation3], %s267
          %s269 = sand.u32 %s77, 1
          %s270 = smul.addr %s269, 8
          %s271 = scalar_lea.vmem [#allocation2], %s270
          %272 = dma.done %s268, 128
        $region40: #{tpu_custom_call.1} parent=35 // pred_fallthru
          _
      $region36: #{tpu_custom_call.1} parent=5 // pred_fallthru
        _
    $region6: #{tpu_custom_call.1} parent=1 // loop_footer
      %s15 = sadd.s32 1, %s11
    $region7: #{tpu_custom_call.1} parent=1 // loop_footer_branch
      %10 = sbr.rel target = $region3
    $region8: #{tpu_custom_call.1} parent=1 // loop_exit
      _
    %273 = vsyncpa [#allocation3], 1
    %s274 = scalar_lea.sflag [#allocation3], 1
    %275 = vsyncpa %s274, 1

</llo_original>
